<compile_context>
chip_gen: v5e
topology: v5e:2x2
jax: 0.10.0
libtpu: 0.0.40
codegen_flags: <defaults>
</compile_context>

<pallas_src>
import functools

import jax
import jax.numpy as jnp
from jax.experimental import pallas as pl
from jax.experimental.pallas import tpu as pltpu

_LANE = 128


def _siamese_kernel(y_ref, z1_ref, z2_ref, x1_ref, x2_ref, r1_ref, r2_ref,
                    o_ref, acc_ref, *,
                    reconstruction_criterion, distance_metric, p_norm,
                    distance_eps, cosine_eps, margin,
                    inv_recon_count, inv_batch):
    c = pl.program_id(0)            # feature-range chunk (maps to a TC on v7x)
    i = pl.program_id(1)            # feature tile within the chunk (reduction axis)
    n_i = pl.num_programs(1)

    # ---------------- init per-chunk accumulator ----------------
    @pl.when(i == 0)
    def _init():
        acc_ref[...] = jnp.zeros_like(acc_ref)

    # -------- per-tile reconstruction partial sums (pure VPU, no XLU) --------
    d1 = r1_ref[...].astype(jnp.float32) - x1_ref[...].astype(jnp.float32)
    d2 = r2_ref[...].astype(jnp.float32) - x2_ref[...].astype(jnp.float32)
    if reconstruction_criterion == "l2":          # nn.MSELoss (sum now, mean at end)
        acc_ref[...] += d1 * d1 + d2 * d2
    else:                                         # 'l1' -> nn.L1Loss
        acc_ref[...] += jnp.abs(d1) + jnp.abs(d2)

    # -------- finalize: one cross-lane reduce + contrastive loss --------
    @pl.when(i == n_i - 1)
    def _finalize():
        recon_partial = jnp.sum(acc_ref[...]) * inv_recon_count

        z1 = z1_ref[...].astype(jnp.float32)
        z2 = z2_ref[...].astype(jnp.float32)
        y = y_ref[...].astype(jnp.float32)        # (B, 1)

        if distance_metric == "pairwise":
            # nn.PairwiseDistance(p, eps): ||z1 - z2 + eps||_p along last dim
            diff = jnp.abs(z1 - z2 + distance_eps)
            if p_norm == 2.0:
                sq = jnp.sum(diff * diff, axis=-1, keepdims=True)
                dist = jnp.sqrt(sq)
                dist_sq = sq                       # reuse the sum of squares directly
            else:
                dist = jnp.power(
                    jnp.sum(jnp.power(diff, p_norm), axis=-1, keepdims=True),
                    1.0 / p_norm)
                dist_sq = dist * dist
        else:
            # nn.CosineSimilarity(dim=1, eps): z1.z2 / max(||z1||*||z2||, eps)
            dot = jnp.sum(z1 * z2, axis=-1, keepdims=True)
            n1 = jnp.sqrt(jnp.sum(z1 * z1, axis=-1, keepdims=True))
            n2 = jnp.sqrt(jnp.sum(z2 * z2, axis=-1, keepdims=True))
            dist = dot / jnp.maximum(n1 * n2, cosine_eps)
            dist_sq = dist * dist

        # standard contrastive loss: mean[(1-y)*d^2 + y*clamp(margin - d, 0)^2]
        hinge = jnp.maximum(margin - dist, 0.0)
        contrastive = jnp.sum((1.0 - y) * dist_sq + y * hinge * hinge) * inv_batch

        # only chunk 0 contributes the contrastive term (added exactly once)
        total = recon_partial + jnp.where(c == 0, contrastive, 0.0)
        # lane-dense store of this chunk's partial; wrapper reads out[c, 0, 0]
        o_ref[...] = jnp.full(o_ref.shape, total, dtype=o_ref.dtype)


def siamese_loss(y, x1, x2, z1, z2, x1_reconstruction, x2_reconstruction, *,
                 reconstruction_criterion="l2", distance_metric="pairwise",
                 p_norm=2.0, distance_eps=1e-6, cosine_eps=1e-8, margin=1.0,
                 feature_tile=1024, num_chunks=2):
    assert reconstruction_criterion in ("l2", "l1")
    assert distance_metric in ("pairwise", "cosine")

    B = x1.shape[0]
    D = z1.shape[-1]
    N = 1
    for s in x1.shape[1:]:
        N *= s

    # Flatten NCHW images to (B, N). Keep the storage dtype (bf16 stays bf16:
    # HBM traffic is the whole cost; the f32 cast happens inside the kernel).
    x1f = x1.reshape(B, N)
    x2f = x2.reshape(B, N)
    r1f = x1_reconstruction.reshape(B, N)
    r2f = x2_reconstruction.reshape(B, N)
    y2d = y.reshape(B, 1).astype(jnp.float32)
    z1 = z1.reshape(B, D)
    z2 = z2.reshape(B, D)

    in_itemsize = jnp.dtype(x1f.dtype).itemsize

    # Pick the feature tile T (multiple of 128); shrink so that the 4 image
    # streams x 2 pipeline buffers + the f32 accumulator fit comfortably under
    # VMEM on every generation (v7x has only 64 MiB physical per TC).
    budget = 20 * 1024 * 1024
    T = max(_LANE,
            (min(int(feature_tile), int(pl.cdiv(N, _LANE)) * _LANE) // _LANE) * _LANE)
    while T > _LANE and B * T * (4 * 2 * in_itemsize + 4) > budget:
        T -= _LANE

    tiles_total = int(pl.cdiv(N, T))
    n_chunks = max(1, min(int(num_chunks), tiles_total))
    tiles_per_chunk = int(pl.cdiv(tiles_total, n_chunks))
    n_pad = n_chunks * tiles_per_chunk * T

    if n_pad != N:
        # Zero-padding both the image and its reconstruction leaves all sums
        # exact; the means below divide by the true element counts.
        pad = ((0, 0), (0, n_pad - N))
        x1f = jnp.pad(x1f, pad)
        x2f = jnp.pad(x2f, pad)
        r1f = jnp.pad(r1f, pad)
        r2f = jnp.pad(r2f, pad)

    kernel = functools.partial(
        _siamese_kernel,
        reconstruction_criterion=reconstruction_criterion,
        distance_metric=distance_metric,
        p_norm=float(p_norm),
        distance_eps=float(distance_eps),
        cosine_eps=float(cosine_eps),
        margin=float(margin),
        inv_recon_count=1.0 / float(B * N),
        inv_batch=1.0 / float(B),
    )

    img_spec = pl.BlockSpec((B, T), lambda c, i: (0, c * tiles_per_chunk + i))
    small_spec = lambda a: pl.BlockSpec(a.shape, lambda c, i: (0, 0))

    grid_spec = pltpu.PrefetchScalarGridSpec(
        num_scalar_prefetch=0,
        grid=(n_chunks, tiles_per_chunk),
        in_specs=[small_spec(y2d), small_spec(z1), small_spec(z2),
                  img_spec, img_spec, img_spec, img_spec],
        out_specs=pl.BlockSpec((1, 8, _LANE), lambda c, i: (c, 0, 0)),
        scratch_shapes=[pltpu.VMEM((B, T), jnp.float32)],
    )

    bytes_accessed = int(4 * B * n_pad * in_itemsize
                         + 2 * B * D * jnp.dtype(z1.dtype).itemsize
                         + B * 4
                         + n_chunks * 8 * _LANE * 4)
    cost = pl.CostEstimate(flops=int(6 * B * N + 10 * B * D),
                           transcendentals=int(2 * B),
                           bytes_accessed=bytes_accessed)

    out = pl.pallas_call(
        kernel,
        out_shape=jax.ShapeDtypeStruct((n_chunks, 8, _LANE), jnp.float32),
        grid_spec=grid_spec,
        compiler_params=pltpu.CompilerParams(
            dimension_semantics=("parallel", "arbitrary"),
            vmem_limit_bytes=32 << 20,
        ),
        cost_estimate=cost,
    )(y2d, z1, z2, x1f, x2f, r1f, r2f)

    # All lanes of block c hold the same per-chunk partial; add the chunk partials.
    return jnp.sum(out[:, 0, 0])


if __name__ == "__main__":
    key = jax.random.PRNGKey(0)
    ks = jax.random.split(key, 14)

    # ---------------- test 1: f32 images, 'l2' + 'pairwise' (p=2) ----------------
    B, C, H, W, D = 8, 4, 16, 16, 32
    y = (jax.random.uniform(ks[0], (B,)) > 0.5).astype(jnp.float32)  # 0 similar, 1 dissimilar
    x1 = jax.random.normal(ks[1], (B, C, H, W), dtype=jnp.float32)
    x2 = jax.random.normal(ks[2], (B, C, H, W), dtype=jnp.float32)
    z1 = jax.random.normal(ks[3], (B, D), dtype=jnp.float32)
    z2 = jax.random.normal(ks[4], (B, D), dtype=jnp.float32)
    x1_rec = x1 + 0.1 * jax.random.normal(ks[5], (B, C, H, W), dtype=jnp.float32)
    x2_rec = x2 + 0.1 * jax.random.normal(ks[6], (B, C, H, W), dtype=jnp.float32)

    loss = siamese_loss(y, x1, x2, z1, z2, x1_rec, x2_rec,
                        reconstruction_criterion="l2", distance_metric="pairwise",
                        p_norm=2.0, distance_eps=1e-6, margin=1.0,
                        feature_tile=256)          # small tile -> exercises grid (2, 2)
    loss = jax.block_until_ready(loss)

    def ref_l2_pairwise():
        mse = lambda a, b: jnp.mean((a - b) ** 2)
        recon = mse(x1_rec, x1) + mse(x2_rec, x2)
        dist = jnp.sqrt(jnp.sum(jnp.abs(z1 - z2 + 1e-6) ** 2, axis=-1))
        hinge = jnp.maximum(1.0 - dist, 0.0)
        contr = jnp.mean((1.0 - y) * dist ** 2 + y * hinge ** 2)
        return recon + contr

    ref1 = jax.block_until_ready(ref_l2_pairwise())
    assert jnp.allclose(loss, ref1, rtol=1e-4, atol=1e-4), (loss, ref1)

    # ------- test 2: bf16 images (non-128-multiple N -> padding path), 'l1' + 'cosine' -------
    B2, C2, H2, W2, D2 = 4, 3, 15, 15, 32
    y_b = (jax.random.uniform(ks[7], (B2,)) > 0.5).astype(jnp.float32)
    a1 = jax.random.normal(ks[8], (B2, C2, H2, W2), dtype=jnp.float32).astype(jnp.bfloat16)
    a2 = jax.random.normal(ks[9], (B2, C2, H2, W2), dtype=jnp.float32).astype(jnp.bfloat16)
    e1 = jax.random.normal(ks[10], (B2, D2), dtype=jnp.float32)
    e2 = jax.random.normal(ks[11], (B2, D2), dtype=jnp.float32)
    a1_rec = (a1.astype(jnp.float32)
              + 0.1 * jax.random.normal(ks[12], (B2, C2, H2, W2))).astype(jnp.bfloat16)
    a2_rec = (a2.astype(jnp.float32)
              + 0.1 * jax.random.normal(ks[13], (B2, C2, H2, W2))).astype(jnp.bfloat16)

    loss2 = siamese_loss(y_b, a1, a2, e1, e2, a1_rec, a2_rec,
                         reconstruction_criterion="l1", distance_metric="cosine",
                         cosine_eps=1e-8, margin=1.0, feature_tile=256)
    loss2 = jax.block_until_ready(loss2)

    def ref_l1_cosine():
        l1 = lambda a, b: jnp.mean(jnp.abs(a.astype(jnp.float32) - b.astype(jnp.float32)))
        recon = l1(a1_rec, a1) + l1(a2_rec, a2)
        dot = jnp.sum(e1 * e2, axis=-1)
        nrm = jnp.sqrt(jnp.sum(e1 * e1, axis=-1)) * jnp.sqrt(jnp.sum(e2 * e2, axis=-1))
        cos = dot / jnp.maximum(nrm, 1e-8)
        hinge = jnp.maximum(1.0 - cos, 0.0)
        contr = jnp.mean((1.0 - y_b) * cos ** 2 + y_b * hinge ** 2)
        return recon + contr

    ref2 = jax.block_until_ready(ref_l1_cosine())
    assert jnp.allclose(loss2, ref2, rtol=1e-4, atol=1e-4), (loss2, ref2)

    print("KERNEL_OK")
</pallas_src>

<mosaic_0001>
module attributes {stable_mosaic.version = 11 : i64} {
  func.func @_siamese_kernel(%arg0: i32, %arg1: i32, %arg2: memref<8x1xf32, #tpu.memory_space<vmem>>, %arg3: memref<8x32xf32, #tpu.memory_space<vmem>>, %arg4: memref<8x32xf32, #tpu.memory_space<vmem>>, %arg5: memref<8x256xf32, #tpu.memory_space<vmem>>, %arg6: memref<8x256xf32, #tpu.memory_space<vmem>>, %arg7: memref<8x256xf32, #tpu.memory_space<vmem>>, %arg8: memref<8x256xf32, #tpu.memory_space<vmem>>, %arg9: memref<1x8x128xf32, #tpu.memory_space<vmem>>, %arg10: memref<8x256xf32, #tpu.memory_space<vmem>>) attributes {dimension_semantics = [#tpu.dimension_semantics<parallel>, #tpu.dimension_semantics<arbitrary>], iteration_bounds = array<i64: 2, 2>, scalar_prefetch = 0 : i64, scratch_operands = 1 : i64, tpu.core_type = #tpu.core_type<tc>, window_params = [{pipeline_mode = #tpu.pipeline_mode<synchronous>, transform_indices = @transform_0, window_bounds = array<i64: 8, 1>}, {pipeline_mode = #tpu.pipeline_mode<synchronous>, transform_indices = @transform_1, window_bounds = array<i64: 8, 32>}, {pipeline_mode = #tpu.pipeline_mode<synchronous>, transform_indices = @transform_2, window_bounds = array<i64: 8, 32>}, {transform_indices = @transform_3, window_bounds = array<i64: 8, 256>}, {transform_indices = @transform_4, window_bounds = array<i64: 8, 256>}, {transform_indices = @transform_5, window_bounds = array<i64: 8, 256>}, {transform_indices = @transform_6, window_bounds = array<i64: 8, 256>}, {transform_indices = @transform_7, window_bounds = array<i64: 1, 8, 128>}]} {
    %c0_i32 = arith.constant 0 : i32
    %0 = arith.cmpi eq, %arg1, %c0_i32 : i32
    %1 = arith.extui %0 : i1 to i32
    %c0_i32_0 = arith.constant 0 : i32
    %2 = arith.cmpi ne, %1, %c0_i32_0 : i32
    scf.if %2 {
      %cst = arith.constant 0.000000e+00 : f32
      %18 = vector.broadcast %cst : f32 to vector<8x256xf32>
      %c0_13 = arith.constant 0 : index
      %c0_14 = arith.constant 0 : index
      %19 = vector.load %arg10[%c0_13, %c0_14] : memref<8x256xf32, #tpu.memory_space<vmem>>, vector<8x256xf32>
      tpu.vector_store %arg10[%c0_13, %c0_14], %18 {strides = array<i32>} : memref<8x256xf32, #tpu.memory_space<vmem>>, vector<8x256xf32>,
    } else {
    }
    %c0 = arith.constant 0 : index
    %c0_1 = arith.constant 0 : index
    %3 = vector.load %arg7[%c0, %c0_1] : memref<8x256xf32, #tpu.memory_space<vmem>>, vector<8x256xf32>
    %c0_2 = arith.constant 0 : index
    %c0_3 = arith.constant 0 : index
    %4 = vector.load %arg5[%c0_2, %c0_3] : memref<8x256xf32, #tpu.memory_space<vmem>>, vector<8x256xf32>
    %5 = arith.subf %3, %4 : vector<8x256xf32>
    %c0_4 = arith.constant 0 : index
    %c0_5 = arith.constant 0 : index
    %6 = vector.load %arg8[%c0_4, %c0_5] : memref<8x256xf32, #tpu.memory_space<vmem>>, vector<8x256xf32>
    %c0_6 = arith.constant 0 : index
    %c0_7 = arith.constant 0 : index
    %7 = vector.load %arg6[%c0_6, %c0_7] : memref<8x256xf32, #tpu.memory_space<vmem>>, vector<8x256xf32>
    %8 = arith.subf %6, %7 : vector<8x256xf32>
    %c0_8 = arith.constant 0 : index
    %c0_9 = arith.constant 0 : index
    %9 = vector.load %arg10[%c0_8, %c0_9] : memref<8x256xf32, #tpu.memory_space<vmem>>, vector<8x256xf32>
    %10 = arith.mulf %5, %5 : vector<8x256xf32>
    %11 = arith.mulf %8, %8 : vector<8x256xf32>
    %12 = arith.addf %10, %11 : vector<8x256xf32>
    %13 = arith.addf %9, %12 : vector<8x256xf32>
    %c0_10 = arith.constant 0 : index
    %c0_11 = arith.constant 0 : index
    %14 = vector.load %arg10[%c0_10, %c0_11] : memref<8x256xf32, #tpu.memory_space<vmem>>, vector<8x256xf32>
    tpu.vector_store %arg10[%c0_10, %c0_11], %13 {strides = array<i32>} : memref<8x256xf32, #tpu.memory_space<vmem>>, vector<8x256xf32>,
    %c1_i32 = arith.constant 1 : i32
    %15 = arith.cmpi eq, %arg1, %c1_i32 : i32
    %16 = arith.extui %15 : i1 to i32
    %c0_i32_12 = arith.constant 0 : i32
    %17 = arith.cmpi ne, %16, %c0_i32_12 : i32
    scf.if %17 {
      %c0_13 = arith.constant 0 : index
      %c0_14 = arith.constant 0 : index
      %18 = vector.load %arg10[%c0_13, %c0_14] : memref<8x256xf32, #tpu.memory_space<vmem>>, vector<8x256xf32>
      %19 = vector.shape_cast %18 : vector<8x256xf32> to vector<1x8x256xf32>
      %cst = arith.constant dense<0.000000e+00> : vector<1xf32>
      %20 = vector.multi_reduction <add>, %19, %cst [1, 2] : vector<1x8x256xf32> to vector<1xf32>
      %21 = vector.shape_cast %20 : vector<1xf32> to vector<1x1x1xf32>
      %22 = vector.extract %21[0, 0, 0] : f32 from vector<1x1x1xf32>
      %cst_15 = arith.constant 1.22070313E-4 : f32
      %23 = arith.mulf %22, %cst_15 : f32
      %c0_16 = arith.constant 0 : index
      %c0_17 = arith.constant 0 : index
      %24 = vector.load %arg3[%c0_16, %c0_17] : memref<8x32xf32, #tpu.memory_space<vmem>>, vector<8x32xf32>
      %c0_18 = arith.constant 0 : index
      %c0_19 = arith.constant 0 : index
      %25 = vector.load %arg4[%c0_18, %c0_19] : memref<8x32xf32, #tpu.memory_space<vmem>>, vector<8x32xf32>
      %c0_20 = arith.constant 0 : index
      %c0_21 = arith.constant 0 : index
      %26 = vector.load %arg2[%c0_20, %c0_21] : memref<8x1xf32, #tpu.memory_space<vmem>>, vector<8x1xf32>
      %27 = arith.subf %24, %25 : vector<8x32xf32>
      %cst_22 = arith.constant 9.99999997E-7 : f32
      %28 = vector.broadcast %cst_22 : f32 to vector<8x32xf32>
      %29 = arith.addf %27, %28 : vector<8x32xf32>
      %30 = math.absf %29 : vector<8x32xf32>
      %31 = arith.mulf %30, %30 : vector<8x32xf32>
      %cst_23 = arith.constant dense<0.000000e+00> : vector<8xf32>
      %32 = vector.multi_reduction <add>, %31, %cst_23 [1] : vector<8x32xf32> to vector<8xf32>
      %33 = vector.shape_cast %32 : vector<8xf32> to vector<8x1xf32>
      %34 = math.sqrt %33 : vector<8x1xf32>
      %cst_24 = arith.constant 1.000000e+00 : f32
      %35 = vector.broadcast %cst_24 : f32 to vector<8x1xf32>
      %36 = arith.subf %35, %34 : vector<8x1xf32>
      %cst_25 = arith.constant 0.000000e+00 : f32
      %37 = vector.broadcast %cst_25 : f32 to vector<8x1xf32>
      %38 = arith.maximumf %36, %37 : vector<8x1xf32>
      %cst_26 = arith.constant 1.000000e+00 : f32
      %39 = vector.broadcast %cst_26 : f32 to vector<8x1xf32>
      %40 = arith.subf %39, %26 : vector<8x1xf32>
      %41 = arith.mulf %40, %33 : vector<8x1xf32>
      %42 = arith.mulf %26, %38 : vector<8x1xf32>
      %43 = arith.mulf %42, %38 : vector<8x1xf32>
      %44 = arith.addf %41, %43 : vector<8x1xf32>
      %45 = vector.shape_cast %44 : vector<8x1xf32> to vector<1x8x1xf32>
      %cst_27 = arith.constant dense<0.000000e+00> : vector<1xf32>
      %46 = vector.multi_reduction <add>, %45, %cst_27 [1, 2] : vector<1x8x1xf32> to vector<1xf32>
      %47 = vector.shape_cast %46 : vector<1xf32> to vector<1x1x1xf32>
      %48 = vector.extract %47[0, 0, 0] : f32 from vector<1x1x1xf32>
      %cst_28 = arith.constant 1.250000e-01 : f32
      %49 = arith.mulf %48, %cst_28 : f32
      %c0_i32_29 = arith.constant 0 : i32
      %50 = arith.cmpi eq, %arg0, %c0_i32_29 : i32
      %cst_30 = arith.constant 0.000000e+00 : f32
      %51 = arith.select %50, %49, %cst_30 : f32
      %52 = arith.addf %23, %51 : f32
      %53 = vector.broadcast %52 : f32 to vector<1x8x128xf32>
      %c0_31 = arith.constant 0 : index
      %c0_32 = arith.constant 0 : index
      %c0_33 = arith.constant 0 : index
      %54 = vector.load %arg9[%c0_31, %c0_32, %c0_33] : memref<1x8x128xf32, #tpu.memory_space<vmem>>, vector<1x8x128xf32>
      tpu.vector_store %arg9[%c0_31, %c0_32, %c0_33], %53 {strides = array<i32>} : memref<1x8x128xf32, #tpu.memory_space<vmem>>, vector<1x8x128xf32>,
    } else {
    }
    return
  }
  func.func @transform_0(%arg0: i32, %arg1: i32) -> (i32, i32) {
    %c0_i32 = arith.constant 0 : i32
    %c0_i32_0 = arith.constant 0 : i32
    %c0_i32_1 = arith.constant 0 : i32
    return %c0_i32, %c0_i32_0 : i32, i32
  }
  func.func @transform_1(%arg0: i32, %arg1: i32) -> (i32, i32) {
    %c0_i32 = arith.constant 0 : i32
    %c0_i32_0 = arith.constant 0 : i32
    %c0_i32_1 = arith.constant 0 : i32
    return %c0_i32, %c0_i32_0 : i32, i32
  }
  func.func @transform_2(%arg0: i32, %arg1: i32) -> (i32, i32) {
    %c0_i32 = arith.constant 0 : i32
    %c0_i32_0 = arith.constant 0 : i32
    %c0_i32_1 = arith.constant 0 : i32
    return %c0_i32, %c0_i32_0 : i32, i32
  }
  func.func @transform_3(%arg0: i32, %arg1: i32) -> (i32, i32) {
    %c2_i32 = arith.constant 2 : i32
    %0 = arith.muli %arg0, %c2_i32 : i32
    %1 = arith.addi %0, %arg1 : i32
    %c0_i32 = arith.constant 0 : i32
    %c0_i32_0 = arith.constant 0 : i32
    return %c0_i32, %1 : i32, i32
  }
  func.func @transform_4(%arg0: i32, %arg1: i32) -> (i32, i32) {
    %c2_i32 = arith.constant 2 : i32
    %0 = arith.muli %arg0, %c2_i32 : i32
    %1 = arith.addi %0, %arg1 : i32
    %c0_i32 = arith.constant 0 : i32
    %c0_i32_0 = arith.constant 0 : i32
    return %c0_i32, %1 : i32, i32
  }
  func.func @transform_5(%arg0: i32, %arg1: i32) -> (i32, i32) {
    %c2_i32 = arith.constant 2 : i32
    %0 = arith.muli %arg0, %c2_i32 : i32
    %1 = arith.addi %0, %arg1 : i32
    %c0_i32 = arith.constant 0 : i32
    %c0_i32_0 = arith.constant 0 : i32
    return %c0_i32, %1 : i32, i32
  }
  func.func @transform_6(%arg0: i32, %arg1: i32) -> (i32, i32) {
    %c2_i32 = arith.constant 2 : i32
    %0 = arith.muli %arg0, %c2_i32 : i32
    %1 = arith.addi %0, %arg1 : i32
    %c0_i32 = arith.constant 0 : i32
    %c0_i32_0 = arith.constant 0 : i32
    return %c0_i32, %1 : i32, i32
  }
  func.func @transform_7(%arg0: i32, %arg1: i32) -> (i32, i32, i32) {
    %c0_i32 = arith.constant 0 : i32
    %c0_i32_0 = arith.constant 0 : i32
    %c0_i32_1 = arith.constant 0 : i32
    return %arg0, %c0_i32, %c0_i32_0 : i32, i32, i32
  }
}

</mosaic_0001>

<llo_original>
// kernel: tpu_custom_call.1
$region0: #{tpu_custom_call.1}
  #allocation0 [shape = 'u32[]', space=smem, size = 0x4, offset = 0x4, fixed_abs, tag = 'smem constant byte address 0x4 - core index']
  #allocation1 [shape = 'u32[72,128]{1,0:T(1,128)}', space=vmem, size = 0x9000, scoped, tag = 'internal scratch']
  #allocation2 [shape = 'f32[8,256]{1,0:T(8,128)}', space=vmem, size = 0x2000, scoped, tag = 'scratch operand']
  %s0 = inlined_call_operand.vmem [shape: f32[8,1], index: 0, kind: input, shape index: {}]
  %s1 = inlined_call_operand.vmem [shape: f32[8,32], index: 1, kind: input, shape index: {}]
  %s2 = inlined_call_operand.hbm [shape: f32[8,32], index: 2, kind: input, shape index: {}]
  %s3 = inlined_call_operand.hbm [shape: f32[8,1024], index: 3, kind: input, shape index: {}]
  %s4 = inlined_call_operand.hbm [shape: f32[8,1024], index: 4, kind: input, shape index: {}]
  %s5 = inlined_call_operand.hbm [shape: f32[8,1024], index: 5, kind: input, shape index: {}]
  %s6 = inlined_call_operand.hbm [shape: f32[8,1024], index: 6, kind: input, shape index: {}]
  %s7 = inlined_call_operand.hbm [shape: f32[2,8,128], index: 7, kind: output, shape index: {}]
  %s8 = sld [smem:[#allocation0]]
  $region89: #{tpu_custom_call.1} parent=0
    _
  %s10 = ssub.s32 1, %s8
  %s11 = scalar_select 0, %s10, %s8
  $region1: #{tpu_custom_call.1} parent=0
    #allocation3 [shape = 'u8[4096]{0}', space=vmem, size = 0x1000, scoped, tag = 'input window, operand 2, single buffered']
    #allocation4 [shape = 's32[2]{0}', space=sflag, size = 0x8, scoped, tag = 'scoped memory for tpu_custom_call.1']
    #allocation5 [shape = 's32[2]{0}', space=sflag, size = 0x8, scoped, tag = 'scoped memory for tpu_custom_call.1']
    #allocation6 [shape = 'u8[16384]{0}', space=vmem, size = 0x4000, scoped, tag = 'input window, operand 3']
    #allocation7 [shape = 's32[2]{0}', space=sflag, size = 0x8, scoped, tag = 'scoped memory for tpu_custom_call.1']
    #allocation8 [shape = 'u8[16384]{0}', space=vmem, size = 0x4000, scoped, tag = 'input window, operand 4']
    #allocation9 [shape = 'u8[16384]{0}', space=vmem, size = 0x4000, scoped, tag = 'input window, operand 5']
    #allocation10 [shape = 's32[2]{0}', space=sflag, size = 0x8, scoped, tag = 'scoped memory for tpu_custom_call.1']
    #allocation11 [shape = 'u8[16384]{0}', space=vmem, size = 0x4000, scoped, tag = 'input window, operand 6']
    #allocation12 [shape = 'u8[8192]{0}', space=vmem, size = 0x2000, scoped, tag = 'output window, operand 0']
    %12 = vsyncpa [#allocation4], 0
    %13 = vsyncpa [#allocation7], 0
    %s14 = scalar_lea.sflag [#allocation7], 1
    %15 = vsyncpa %s14, 0
    %16 = vsyncpa [#allocation10], 0
    %s17 = scalar_lea.sflag [#allocation10], 1
    %18 = vsyncpa %s17, 0
    %19 = vsyncpa [#allocation5], 0
    %s20 = scalar_lea.sflag [#allocation5], 1
    %21 = vsyncpa %s20, 0
    loop: start=0, step=1, limit=6
    $region2: #{tpu_custom_call.1} parent=1 // loop_pre_header
      _
    $region3: #{tpu_custom_call.1} parent=1 // loop_header
      %s23 = sphi 0, %s27
      %p24 = scmp.ge.s32.totalorder %s23, 6
      %s30 = sphi 0, %s42
      %s31 = sphi 0, %s38
      %s32 = sphi 0, %s30
      %s33 = sphi 0, %s31
      %s34 = sphi 0, %s32
      %s35 = sphi 0, %s33
      %s43 = sphi 0, %s43
      %s45 = sphi 0, %s43
      %s46 = sphi 0, %s45
      %s60 = sphi 0, %s46
      %s64 = sphi 0, %s64
      %s66 = sphi 0, %s64
      %s67 = sphi 0, %s66
      %s81 = sphi 0, %s67
      %s85 = sphi 0, %s85
      %s87 = sphi 0, %s85
      %s88 = sphi 0, %s87
      %s102 = sphi 0, %s88
      %s112 = sphi 0, %s114
      %s115 = sphi 0, %s112
      %s116 = sphi 0, %s115
      %s132 = sphi 0, %s116
      %s142 = sphi 0, %s144
      %s145 = sphi 0, %s142
      %s146 = sphi 0, %s145
      %s162 = sphi 0, %s146
      %s172 = sphi 0, %s174
      %s175 = sphi 0, %s172
      %s176 = sphi 0, %s175
      %s192 = sphi 0, %s176
      %s202 = sphi 0, %s204
      %s205 = sphi 0, %s202
      %s206 = sphi 0, %s205
      %s222 = sphi 0, %s206
      %s228 = sphi 0, %s230
      %s231 = sphi 0, %s228
      %s232 = sphi 0, %s231
      %s248 = sphi 0, %s232
    $region4: #{tpu_custom_call.1} parent=1 // loop_header_branch
      %26 = sbr.rel (%p24) target = $region8
    $region5: #{tpu_custom_call.1} parent=1 // loop_body
      %s28 = ssub.s32 %s23, 1
      %s29 = ssub.s32 %s23, 2
      %s36 = sadd.s32 1, %s31
      %p37 = scmp.ge.s32.totalorder %s36, 2
      %s38 = scalar_select %p37, 0, %s36
      %s39 = sadd.s32 1, %s30
      %s40 = scalar_select %p37, %s39, %s30
      %p41 = scmp.ge.s32.totalorder %s40, 2
      %s42 = scalar_select %p41, 0, %s40
      %s44 = sadd.s32 %s43, 1
      %p47 = scmp.eq.s32.totalorder %s23, 3
      %p48 = scmp.ne.s32.totalorder %s43, %s45
      %p49 = scmp.eq.s32.totalorder %s23, 0
      %p50 = por %p48, %p49
      %p51 = scmp.ne.s32.totalorder %s43, %s45
      %p52 = scmp.eq.s32.totalorder %s28, 3
      %p53 = por %p51, %p52
      %p54 = scmp.ne.s32.totalorder %s45, %s46
      %p55 = scmp.eq.s32.totalorder %s28, 0
      %p56 = por %p54, %p55
      %p57 = scmp.ne.s32.totalorder %s45, %s46
      %p58 = scmp.eq.s32.totalorder %s29, 3
      %p59 = por %p57, %p58
      %p61 = scmp.ne.s32.totalorder %s46, %s60
      %p62 = scmp.eq.s32.totalorder %s29, 0
      %p63 = por %p61, %p62
      %s65 = sadd.s32 %s64, 1
      %p68 = scmp.eq.s32.totalorder %s23, 3
      %p69 = scmp.ne.s32.totalorder %s64, %s66
      %p70 = scmp.eq.s32.totalorder %s23, 0
      %p71 = por %p69, %p70
      %p72 = scmp.ne.s32.totalorder %s64, %s66
      %p73 = scmp.eq.s32.totalorder %s28, 3
      %p74 = por %p72, %p73
      %p75 = scmp.ne.s32.totalorder %s66, %s67
      %p76 = scmp.eq.s32.totalorder %s28, 0
      %p77 = por %p75, %p76
      %p78 = scmp.ne.s32.totalorder %s66, %s67
      %p79 = scmp.eq.s32.totalorder %s29, 3
      %p80 = por %p78, %p79
      %p82 = scmp.ne.s32.totalorder %s67, %s81
      %p83 = scmp.eq.s32.totalorder %s29, 0
      %p84 = por %p82, %p83
      %s86 = sadd.s32 %s85, 1
      %p89 = scmp.eq.s32.totalorder %s23, 3
      %p90 = scmp.ne.s32.totalorder %s85, %s87
      %p91 = scmp.eq.s32.totalorder %s23, 0
      %p92 = por %p90, %p91
      %p93 = scmp.ne.s32.totalorder %s85, %s87
      %p94 = scmp.eq.s32.totalorder %s28, 3
      %p95 = por %p93, %p94
      %p96 = scmp.ne.s32.totalorder %s87, %s88
      %p97 = scmp.eq.s32.totalorder %s28, 0
      %p98 = por %p96, %p97
      %p99 = scmp.ne.s32.totalorder %s87, %s88
      %p100 = scmp.eq.s32.totalorder %s29, 3
      %p101 = por %p99, %p100
      %p103 = scmp.ne.s32.totalorder %s88, %s102
      %p104 = scmp.eq.s32.totalorder %s29, 0
      %p105 = por %p103, %p104
      %s106 = smul.u32 %s30, 2
      %s107 = sadd.s32 %s106, %s31
      %s108 = smul.u32 %s42, 2
      %s109 = sadd.s32 %s108, %s38
      %s110 = ssub.s32 %s107, %s109
      %p111 = scmp.eq.s32.totalorder %s110, 0
      %s113 = sadd.s32 %s112, 1
      %s114 = scalar_select %p111, %s112, %s113
      %p117 = pneg %p111
      %p118 = scmp.eq.s32.totalorder %s23, 3
      %p119 = por %p117, %p118
      %p120 = scmp.ne.s32.totalorder %s112, %s115
      %p121 = scmp.eq.s32.totalorder %s23, 0
      %p122 = por %p120, %p121
      %p123 = scmp.ne.s32.totalorder %s112, %s115
      %p124 = scmp.eq.s32.totalorder %s28, 3
      %p125 = por %p123, %p124
      %p126 = scmp.ne.s32.totalorder %s115, %s116
      %p127 = scmp.eq.s32.totalorder %s28, 0
      %p128 = por %p126, %p127
      %p129 = scmp.ne.s32.totalorder %s115, %s116
      %p130 = scmp.eq.s32.totalorder %s29, 3
      %p131 = por %p129, %p130
      %p133 = scmp.ne.s32.totalorder %s116, %s132
      %p134 = scmp.eq.s32.totalorder %s29, 0
      %p135 = por %p133, %p134
      %s136 = smul.u32 %s30, 2
      %s137 = sadd.s32 %s136, %s31
      %s138 = smul.u32 %s42, 2
      %s139 = sadd.s32 %s138, %s38
      %s140 = ssub.s32 %s137, %s139
      %p141 = scmp.eq.s32.totalorder %s140, 0
      %s143 = sadd.s32 %s142, 1
      %s144 = scalar_select %p141, %s142, %s143
      %p147 = pneg %p141
      %p148 = scmp.eq.s32.totalorder %s23, 3
      %p149 = por %p147, %p148
      %p150 = scmp.ne.s32.totalorder %s142, %s145
      %p151 = scmp.eq.s32.totalorder %s23, 0
      %p152 = por %p150, %p151
      %p153 = scmp.ne.s32.totalorder %s142, %s145
      %p154 = scmp.eq.s32.totalorder %s28, 3
      %p155 = por %p153, %p154
      %p156 = scmp.ne.s32.totalorder %s145, %s146
      %p157 = scmp.eq.s32.totalorder %s28, 0
      %p158 = por %p156, %p157
      %p159 = scmp.ne.s32.totalorder %s145, %s146
      %p160 = scmp.eq.s32.totalorder %s29, 3
      %p161 = por %p159, %p160
      %p163 = scmp.ne.s32.totalorder %s146, %s162
      %p164 = scmp.eq.s32.totalorder %s29, 0
      %p165 = por %p163, %p164
      %s166 = smul.u32 %s30, 2
      %s167 = sadd.s32 %s166, %s31
      %s168 = smul.u32 %s42, 2
      %s169 = sadd.s32 %s168, %s38
      %s170 = ssub.s32 %s167, %s169
      %p171 = scmp.eq.s32.totalorder %s170, 0
      %s173 = sadd.s32 %s172, 1
      %s174 = scalar_select %p171, %s172, %s173
      %p177 = pneg %p171
      %p178 = scmp.eq.s32.totalorder %s23, 3
      %p179 = por %p177, %p178
      %p180 = scmp.ne.s32.totalorder %s172, %s175
      %p181 = scmp.eq.s32.totalorder %s23, 0
      %p182 = por %p180, %p181
      %p183 = scmp.ne.s32.totalorder %s172, %s175
      %p184 = scmp.eq.s32.totalorder %s28, 3
      %p185 = por %p183, %p184
      %p186 = scmp.ne.s32.totalorder %s175, %s176
      %p187 = scmp.eq.s32.totalorder %s28, 0
      %p188 = por %p186, %p187
      %p189 = scmp.ne.s32.totalorder %s175, %s176
      %p190 = scmp.eq.s32.totalorder %s29, 3
      %p191 = por %p189, %p190
      %p193 = scmp.ne.s32.totalorder %s176, %s192
      %p194 = scmp.eq.s32.totalorder %s29, 0
      %p195 = por %p193, %p194
      %s196 = smul.u32 %s30, 2
      %s197 = sadd.s32 %s196, %s31
      %s198 = smul.u32 %s42, 2
      %s199 = sadd.s32 %s198, %s38
      %s200 = ssub.s32 %s197, %s199
      %p201 = scmp.eq.s32.totalorder %s200, 0
      %s203 = sadd.s32 %s202, 1
      %s204 = scalar_select %p201, %s202, %s203
      %p207 = pneg %p201
      %p208 = scmp.eq.s32.totalorder %s23, 3
      %p209 = por %p207, %p208
      %p210 = scmp.ne.s32.totalorder %s202, %s205
      %p211 = scmp.eq.s32.totalorder %s23, 0
      %p212 = por %p210, %p211
      %p213 = scmp.ne.s32.totalorder %s202, %s205
      %p214 = scmp.eq.s32.totalorder %s28, 3
      %p215 = por %p213, %p214
      %p216 = scmp.ne.s32.totalorder %s205, %s206
      %p217 = scmp.eq.s32.totalorder %s28, 0
      %p218 = por %p216, %p217
      %p219 = scmp.ne.s32.totalorder %s205, %s206
      %p220 = scmp.eq.s32.totalorder %s29, 3
      %p221 = por %p219, %p220
      %p223 = scmp.ne.s32.totalorder %s206, %s222
      %p224 = scmp.eq.s32.totalorder %s29, 0
      %p225 = por %p223, %p224
      %s226 = ssub.s32 %s30, %s42
      %p227 = scmp.eq.s32.totalorder %s226, 0
      %s229 = sadd.s32 %s228, 1
      %s230 = scalar_select %p227, %s228, %s229
      %p233 = pneg %p227
      %p234 = scmp.eq.s32.totalorder %s23, 3
      %p235 = por %p233, %p234
      %p236 = scmp.ne.s32.totalorder %s228, %s231
      %p237 = scmp.eq.s32.totalorder %s23, 0
      %p238 = por %p236, %p237
      %p239 = scmp.ne.s32.totalorder %s228, %s231
      %p240 = scmp.eq.s32.totalorder %s28, 3
      %p241 = por %p239, %p240
      %p242 = scmp.ne.s32.totalorder %s231, %s232
      %p243 = scmp.eq.s32.totalorder %s28, 0
      %p244 = por %p242, %p243
      %p245 = scmp.ne.s32.totalorder %s231, %s232
      %p246 = scmp.eq.s32.totalorder %s29, 3
      %p247 = por %p245, %p246
      %p249 = scmp.ne.s32.totalorder %s232, %s248
      %p250 = scmp.eq.s32.totalorder %s29, 0
      %p251 = por %p249, %p250
      %p252 = scmp.le.s32.totalorder 1, %s23
      %p253 = scmp.lt.s32.totalorder %s23, 5
      %p254 = pnand %p252, %p253
      %p255 = pneg %p254
      // Predicated region
      $region9: #{tpu_custom_call.1} parent=5 // pred_check
        _
      $region10: #{tpu_custom_call.1} parent=5 // pred_check_branch
        %257 = sbr.rel (%p254) target = $region12
      $region11: #{tpu_custom_call.1} parent=5 // pred_region
        %s258 = ssub.s32 %s23, 1
        // Predicated region
        $region13: #{tpu_custom_call.1} parent=11 // pred_check
          %p259 = pneg %p56
        $region14: #{tpu_custom_call.1} parent=11 // pred_check_branch
          %261 = sbr.rel (%p259) target = $region16
        $region15: #{tpu_custom_call.1} parent=11 // pred_region
          _
        $region16: #{tpu_custom_call.1} parent=11 // pred_fallthru
          _
        // Predicated region
        $region17: #{tpu_custom_call.1} parent=11 // pred_check
          %p262 = pneg %p77
        $region18: #{tpu_custom_call.1} parent=11 // pred_check_branch
          %264 = sbr.rel (%p262) target = $region20
        $region19: #{tpu_custom_call.1} parent=11 // pred_region
          _
        $region20: #{tpu_custom_call.1} parent=11 // pred_fallthru
          _
        // Predicated region
        $region21: #{tpu_custom_call.1} parent=11 // pred_check
          %p265 = pneg %p98
        $region22: #{tpu_custom_call.1} parent=11 // pred_check_branch
          %267 = sbr.rel (%p265) target = $region24
        $region23: #{tpu_custom_call.1} parent=11 // pred_region
          %269 = vsyncadd [#allocation4], 0
          %s271 = sshll.u32 %s2, 4
          %s272 = int_to_ptr.hbm [resolvable:$true] %s271
          %s273 = sshll.u32 [#allocation3], 4
          %s274 = int_to_ptr.vmem [resolvable:$true] %s273
          %276 = dma.hbm_to_vmem [thread:$0]  %s272, 128, %s274, [#allocation4]
        $region24: #{tpu_custom_call.1} parent=11 // pred_fallthru
          _
      $region12: #{tpu_custom_call.1} parent=5 // pred_fallthru
        _
      %p277 = scmp.lt.s32.totalorder %s23, 4
      // Predicated region
      $region25: #{tpu_custom_call.1} parent=5 // pred_check
        %p278 = pneg %p277
      $region26: #{tpu_custom_call.1} parent=5 // pred_check_branch
        %280 = sbr.rel (%p278) target = $region28
      $region27: #{tpu_custom_call.1} parent=5 // pred_region
        // Predicated region
        $region29: #{tpu_custom_call.1} parent=27 // pred_check
          %p281 = pneg %p122
        $region30: #{tpu_custom_call.1} parent=27 // pred_check_branch
          %283 = sbr.rel (%p281) target = $region32
        $region31: #{tpu_custom_call.1} parent=27 // pred_region
          %s284 = sand.u32 %s23, 1
          %s285 = scalar_lea.sflag [#allocation7], %s284
          %s286 = sand.u32 %s112, 1
          %s287 = smul.addr %s286, 16
          %s288 = scalar_lea.vmem [#allocation6], %s287
          %s289 = smul.u32 %s30, 2
          %s290 = sadd.s32 %s289, %s31
          %s291 = smul.u32 2, %s290
          %293 = vsyncadd %s285, 0
          %s294 = smul.addr %s291, 8
          %s295 = scalar_lea.hbm %s3, %s294
          %s297 = sshll.u32 %s295, 4
          %s298 = int_to_ptr.hbm [resolvable:$true] %s297
          %s299 = sshll.u32 %s288, 4
          %s300 = int_to_ptr.vmem [resolvable:$true] %s299
          %302 = dma.hbm_to_vmem [thread:$0]  %s298, 256, %s300, %s285
        $region32: #{tpu_custom_call.1} parent=27 // pred_fallthru
          _
        // Predicated region
        $region33: #{tpu_custom_call.1} parent=27 // pred_check
          %p303 = pneg %p152
        $region34: #{tpu_custom_call.1} parent=27 // pred_check_branch
          %305 = sbr.rel (%p303) target = $region36
        $region35: #{tpu_custom_call.1} parent=27 // pred_region
          %s306 = sand.u32 %s23, 1
          %s307 = scalar_lea.sflag [#allocation7], %s306
          %s308 = sand.u32 %s142, 1
          %s309 = smul.addr %s308, 16
          %s310 = scalar_lea.vmem [#allocation8], %s309
          %s311 = smul.u32 %s30, 2
          %s312 = sadd.s32 %s311, %s31
          %s313 = smul.u32 2, %s312
          %315 = vsyncadd %s307, 0
          %s316 = smul.addr %s313, 8
          %s317 = scalar_lea.hbm %s4, %s316
          %s319 = sshll.u32 %s317, 4
          %s320 = int_to_ptr.hbm [resolvable:$true] %s319
          %s321 = sshll.u32 %s310, 4
          %s322 = int_to_ptr.vmem [resolvable:$true] %s321
          %324 = dma.hbm_to_vmem [thread:$0]  %s320, 256, %s322, %s307
        $region36: #{tpu_custom_call.1} parent=27 // pred_fallthru
          _
        // Predicated region
        $region37: #{tpu_custom_call.1} parent=27 // pred_check
          %p325 = pneg %p182
        $region38: #{tpu_custom_call.1} parent=27 // pred_check_branch
          %327 = sbr.rel (%p325) target = $region40
        $region39: #{tpu_custom_call.1} parent=27 // pred_region
          %s328 = sand.u32 %s23, 1
          %s329 = scalar_lea.sflag [#allocation10], %s328
          %s330 = sand.u32 %s172, 1
          %s331 = smul.addr %s330, 16
          %s332 = scalar_lea.vmem [#allocation9], %s331
          %s333 = smul.u32 %s30, 2
          %s334 = sadd.s32 %s333, %s31
          %s335 = smul.u32 2, %s334
          %337 = vsyncadd %s329, 0
          %s338 = smul.addr %s335, 8
          %s339 = scalar_lea.hbm %s5, %s338
          %s341 = sshll.u32 %s339, 4
          %s342 = int_to_ptr.hbm [resolvable:$true] %s341
          %s343 = sshll.u32 %s332, 4
          %s344 = int_to_ptr.vmem [resolvable:$true] %s343
          %346 = dma.hbm_to_vmem [thread:$0]  %s342, 256, %s344, %s329
        $region40: #{tpu_custom_call.1} parent=27 // pred_fallthru
          _
        // Predicated region
        $region41: #{tpu_custom_call.1} parent=27 // pred_check
          %p347 = pneg %p212
        $region42: #{tpu_custom_call.1} parent=27 // pred_check_branch
          %349 = sbr.rel (%p347) target = $region44
        $region43: #{tpu_custom_call.1} parent=27 // pred_region
          %s350 = sand.u32 %s23, 1
          %s351 = scalar_lea.sflag [#allocation10], %s350
          %s352 = sand.u32 %s202, 1
          %s353 = smul.addr %s352, 16
          %s354 = scalar_lea.vmem [#allocation11], %s353
          %s355 = smul.u32 %s30, 2
          %s356 = sadd.s32 %s355, %s31
          %s357 = smul.u32 2, %s356
          %359 = vsyncadd %s351, 0
          %s360 = smul.addr %s357, 8
          %s361 = scalar_lea.hbm %s6, %s360
          %s363 = sshll.u32 %s361, 4
          %s364 = int_to_ptr.hbm [resolvable:$true] %s363
          %s365 = sshll.u32 %s354, 4
          %s366 = int_to_ptr.vmem [resolvable:$true] %s365
          %368 = dma.hbm_to_vmem [thread:$0]  %s364, 256, %s366, %s351
        $region44: #{tpu_custom_call.1} parent=27 // pred_fallthru
          _
      $region28: #{tpu_custom_call.1} parent=5 // pred_fallthru
        _
      %p369 = scmp.le.s32.totalorder 1, %s23
      %p370 = scmp.lt.s32.totalorder %s23, 5
      %p371 = pnand %p369, %p370
      %p372 = pneg %p371
      // Predicated region
      $region45: #{tpu_custom_call.1} parent=5 // pred_check
        _
      $region46: #{tpu_custom_call.1} parent=5 // pred_check_branch
        %374 = sbr.rel (%p371) target = $region48
      $region47: #{tpu_custom_call.1} parent=5 // pred_region
        %s375 = ssub.s32 %s23, 1
        // Predicated region
        $region49: #{tpu_custom_call.1} parent=47 // pred_check
          %p376 = pneg %p98
        $region50: #{tpu_custom_call.1} parent=47 // pred_check_branch
          %378 = sbr.rel (%p376) target = $region52
        $region51: #{tpu_custom_call.1} parent=47 // pred_region
          %380 = dma.done [#allocation4], 128
        $region52: #{tpu_custom_call.1} parent=47 // pred_fallthru
          _
        %s381 = sand.u32 %s28, 1
        %s382 = scalar_lea.sflag [#allocation7], %s381
        %s383 = sand.u32 %s115, 1
        %s384 = smul.addr %s383, 16
        %s385 = scalar_lea.vmem [#allocation6], %s384
        // Predicated region
        $region53: #{tpu_custom_call.1} parent=47 // pred_check
          %p386 = pneg %p128
        $region54: #{tpu_custom_call.1} parent=47 // pred_check_branch
          %388 = sbr.rel (%p386) target = $region56
        $region55: #{tpu_custom_call.1} parent=47 // pred_region
          %390 = dma.done %s382, 256
        $region56: #{tpu_custom_call.1} parent=47 // pred_fallthru
          _
        %s391 = sand.u32 %s28, 1
        %s392 = scalar_lea.sflag [#allocation7], %s391
        %s393 = sand.u32 %s145, 1
        %s394 = smul.addr %s393, 16
        %s395 = scalar_lea.vmem [#allocation8], %s394
        // Predicated region
        $region57: #{tpu_custom_call.1} parent=47 // pred_check
          %p396 = pneg %p158
        $region58: #{tpu_custom_call.1} parent=47 // pred_check_branch
          %398 = sbr.rel (%p396) target = $region60
        $region59: #{tpu_custom_call.1} parent=47 // pred_region
          %400 = dma.done %s392, 256
        $region60: #{tpu_custom_call.1} parent=47 // pred_fallthru
          _
        %s401 = sand.u32 %s28, 1
        %s402 = scalar_lea.sflag [#allocation10], %s401
        %s403 = sand.u32 %s175, 1
        %s404 = smul.addr %s403, 16
        %s405 = scalar_lea.vmem [#allocation9], %s404
        // Predicated region
        $region61: #{tpu_custom_call.1} parent=47 // pred_check
          %p406 = pneg %p188
        $region62: #{tpu_custom_call.1} parent=47 // pred_check_branch
          %408 = sbr.rel (%p406) target = $region64
        $region63: #{tpu_custom_call.1} parent=47 // pred_region
          %410 = dma.done %s402, 256
        $region64: #{tpu_custom_call.1} parent=47 // pred_fallthru
          _
        %s411 = sand.u32 %s28, 1
        %s412 = scalar_lea.sflag [#allocation10], %s411
        %s413 = sand.u32 %s205, 1
        %s414 = smul.addr %s413, 16
        %s415 = scalar_lea.vmem [#allocation11], %s414
        // Predicated region
        $region65: #{tpu_custom_call.1} parent=47 // pred_check
          %p416 = pneg %p218
        $region66: #{tpu_custom_call.1} parent=47 // pred_check_branch
          %418 = sbr.rel (%p416) target = $region68
        $region67: #{tpu_custom_call.1} parent=47 // pred_region
          %420 = dma.done %s412, 256
        $region68: #{tpu_custom_call.1} parent=47 // pred_fallthru
          _
        %p421 = pneg %p56
        %p422 = pneg %p53
        %p423 = pneg %p77
        %p424 = pneg %p74
        %p425 = pneg %p98
        %p426 = pneg %p95
        %s427 = sand.u32 %s28, 1
        %s428 = scalar_lea.sflag [#allocation7], %s427
        %s429 = sand.u32 %s115, 1
        %s430 = smul.addr %s429, 16
        %s431 = scalar_lea.vmem [#allocation6], %s430
        %p432 = pneg %p128
        %p433 = pneg %p125
        %s434 = sand.u32 %s28, 1
        %s435 = scalar_lea.sflag [#allocation7], %s434
        %s436 = sand.u32 %s145, 1
        %s437 = smul.addr %s436, 16
        %s438 = scalar_lea.vmem [#allocation8], %s437
        %p439 = pneg %p158
        %p440 = pneg %p155
        %s441 = sand.u32 %s28, 1
        %s442 = scalar_lea.sflag [#allocation10], %s441
        %s443 = sand.u32 %s175, 1
        %s444 = smul.addr %s443, 16
        %s445 = scalar_lea.vmem [#allocation9], %s444
        %p446 = pneg %p188
        %p447 = pneg %p185
        %s448 = sand.u32 %s28, 1
        %s449 = scalar_lea.sflag [#allocation10], %s448
        %s450 = sand.u32 %s205, 1
        %s451 = smul.addr %s450, 16
        %s452 = scalar_lea.vmem [#allocation11], %s451
        %p453 = pneg %p218
        %p454 = pneg %p215
        %p455 = pneg %p244
        %p456 = pneg %p241
        %s457 = sand.u32 %s231, 1
        %s458 = scalar_lea.sflag [#allocation5], %s457
        %s459 = sand.u32 %s231, 1
        %s460 = smul.addr %s459, 8
        %s461 = scalar_lea.vmem [#allocation12], %s460
        %s462 = smul.u32 %s32, 2
        %s463 = sadd.s32 %s462, %s33
        %s464 = smul.u32 2, %s463
        %s465 = smul.u32 %s32, 2
        %s466 = sadd.s32 %s465, %s33
        %s467 = smul.u32 2, %s466
        %s468 = smul.u32 %s32, 2
        %s469 = sadd.s32 %s468, %s33
        %s470 = smul.u32 2, %s469
        %s471 = smul.u32 %s32, 2
        %s472 = sadd.s32 %s471, %s33
        %s473 = smul.u32 2, %s472
        %p474 = scmp.eq.s32.totalorder %s33, 0
        // Predicated region
        $region69: #{tpu_custom_call.1} parent=47 // pred_check
          %p475 = pneg %p474
        $region70: #{tpu_custom_call.1} parent=47 // pred_check_branch
          %477 = sbr.rel (%p475) target = $region72
        $region71: #{tpu_custom_call.1} parent=47 // pred_region
          %478 = vst [vmem:[#allocation2] sm:$0xff] 0.0
          %479 = vst [vmem:[#allocation2 + $0x8] sm:$0xff] 0.0
        $region72: #{tpu_custom_call.1} parent=47 // pred_fallthru
          _
        %v480 = vld [vmem:[%s405] sm:$0xff]
        %v481 = vld [vmem:[%s405 + $0x8] sm:$0xff]
        %v482 = vld [vmem:[%s385] sm:$0xff]
        %v483 = vld [vmem:[%s385 + $0x8] sm:$0xff]
        %v484 = vsub.f32 %v480, %v482
        %v485 = vsub.f32 %v481, %v483
        %v486 = vld [vmem:[%s415] sm:$0xff]
        %v487 = vld [vmem:[%s415 + $0x8] sm:$0xff]
        %v488 = vld [vmem:[%s395] sm:$0xff]
        %v489 = vld [vmem:[%s395 + $0x8] sm:$0xff]
        %v490 = vsub.f32 %v486, %v488
        %v491 = vsub.f32 %v487, %v489
        %v492 = vld [vmem:[#allocation2] sm:$0xff]
        %v493 = vld [vmem:[#allocation2 + $0x8] sm:$0xff]
        %v494 = vmul.f32 %v484, %v484
        %v495 = vmul.f32 %v485, %v485
        %v496 = vmul.f32 %v490, %v490
        %v497 = vmul.f32 %v491, %v491
        %v498 = vadd.f32 %v494, %v496
        %v499 = vadd.f32 %v495, %v497
        %v500 = vadd.f32 %v492, %v498
        %v501 = vadd.f32 %v493, %v499
        %502 = vst [vmem:[#allocation2] sm:$0xff] %v500
        %503 = vst [vmem:[#allocation2 + $0x8] sm:$0xff] %v501
        %p504 = scmp.eq.s32.totalorder %s33, 1
        // Predicated region
        $region73: #{tpu_custom_call.1} parent=47 // pred_check
          %p505 = pneg %p504
        $region74: #{tpu_custom_call.1} parent=47 // pred_check_branch
          %507 = sbr.rel (%p505) target = $region76
        $region75: #{tpu_custom_call.1} parent=47 // pred_region
          %v508 = vld [vmem:[#allocation2] sm:$0xff]
          %v509 = vld [vmem:[#allocation2 + $0x8] sm:$0xff]
          %v510 = vadd.f32 %v508, %v509
          %511 = vadd.xlane.f32.xlu0 %v510
          %v512 = vpop.xlane.xlu0 %511
          %v513 = vrot.slane %v512, 4
          %v514 = vadd.f32 %v512, %v513
          %v515 = vrot.slane %v514, 2
          %v516 = vadd.f32 %v514, %v515
          %v517 = vrot.slane %v516, 1
          %v518 = vadd.f32 %v516, %v517
          %s519 = vtos %v518
          %s520 = smul.f32 %s519, 0.00012207031
          %v521 = vld [vmem:[%s1] sm:$0xff]
          %v522 = vld [vmem:[#allocation3] sm:$0xff]
          %v523 = vld [vmem:[%s0] sm:$0xff]
          %v524 = vsub.f32 %v521, %v522
          %v525 = vadd.f32 %v524, 1e-06
          %v526 = vand.u32 2147483647, %v525
          %v527 = vmul.f32 %v526, %v526
          %vm528 = vcmask 261120
          %v529 = vsel %vm528, %v527, 0.0
          %530 = vadd.xlane.f32.xlu0 %v529
          %v531 = vpop.xlane.xlu0 %530
          %v532 = vrsqrt.pop %v531
          %v533 = vmul.f32 %v532, %v531
          %v534 = vmul.f32 %v533, %v532
          %v535 = vmul.f32 0.5, %v534
          %v536 = vsub.f32 1.5, %v535
          %v537 = vmul.f32 %v532, %v536
          %v538 = vmul.f32 %v531, %v537
          %vm539 = vcmp.eq.f32.partialorder %v531, inf
          %v540 = vsel %vm539, %v531, %v538
          %vm541 = vcmp.eq.f32.partialorder %v531, 0.0
          %v542 = vand.u32 %v531, 2147483648
          %v543 = vsel %vm541, %v542, %v540
          %v544 = vsub.f32 1.0, %v543
          %v545 = vmax.f32 %v544, 0.0
          %v546 = vsub.f32 1.0, %v523
          %v547 = vmul.f32 %v546, %v531
          %v548 = vmul.f32 %v523, %v545
          %v549 = vmul.f32 %v548, %v545
          %v550 = vadd.f32 %v547, %v549
          %vm551 = vcmask 7168
          %v552 = vsel %vm551, %v550, 0.0
          %553 = vadd.xlane.f32.xlu0 %v552
          %v554 = vpop.xlane.xlu0 %553
          %v555 = vrot.slane %v554, 4
          %v556 = vadd.f32 %v554, %v555
          %v557 = vrot.slane %v556, 2
          %v558 = vadd.f32 %v556, %v557
          %v559 = vrot.slane %v558, 1
          %v560 = vadd.f32 %v558, %v559
          %s561 = vtos %v560
          %s562 = smul.f32 %s561, 0.125
          %p563 = scmp.eq.s32.totalorder %s32, 0
          %s564 = scalar_select %p563, %s562, 0.0
          %s565 = sadd.f32 %s520, %s564
          %v566 = vstv %s565
          %567 = vst [vmem:[%s461] sm:$0xff] %v566
        $region76: #{tpu_custom_call.1} parent=47 // pred_fallthru
          _
        %s568 = sand.u32 %s231, 1
        %s569 = scalar_lea.sflag [#allocation5], %s568
        %s570 = sand.u32 %s231, 1
        %s571 = smul.addr %s570, 8
        %s572 = scalar_lea.vmem [#allocation12], %s571
        // Predicated region
        $region77: #{tpu_custom_call.1} parent=47 // pred_check
          %p573 = pneg %p241
        $region78: #{tpu_custom_call.1} parent=47 // pred_check_branch
          %575 = sbr.rel (%p573) target = $region80
        $region79: #{tpu_custom_call.1} parent=47 // pred_region
          %577 = vsyncadd %s569, 0
          %s578 = smul.addr %s32, 8
          %s579 = scalar_lea.hbm %s7, %s578
          %s581 = sshll.u32 %s572, 4
          %s582 = int_to_ptr.vmem [resolvable:$true] %s581
          %s583 = sshll.u32 %s579, 4
          %s584 = int_to_ptr.hbm [resolvable:$true] %s583
          %586 = dma.vmem_to_hbm [thread:$0]  %s582, 128, %s584, %s569
        $region80: #{tpu_custom_call.1} parent=47 // pred_fallthru
          _
      $region48: #{tpu_custom_call.1} parent=5 // pred_fallthru
        _
      %p587 = scmp.le.s32.totalorder 2, %s23
      // Predicated region
      $region81: #{tpu_custom_call.1} parent=5 // pred_check
        %p588 = pneg %p587
      $region82: #{tpu_custom_call.1} parent=5 // pred_check_branch
        %590 = sbr.rel (%p588) target = $region84
      $region83: #{tpu_custom_call.1} parent=5 // pred_region
        %s591 = ssub.s32 %s23, 2
        // Predicated region
        $region85: #{tpu_custom_call.1} parent=83 // pred_check
          %p592 = pneg %p247
        $region86: #{tpu_custom_call.1} parent=83 // pred_check_branch
          %594 = sbr.rel (%p592) target = $region88
        $region87: #{tpu_custom_call.1} parent=83 // pred_region
          %s595 = sand.u32 %s232, 1
          %s596 = scalar_lea.sflag [#allocation5], %s595
          %s597 = sand.u32 %s232, 1
          %s598 = smul.addr %s597, 8
          %s599 = scalar_lea.vmem [#allocation12], %s598
          %601 = dma.done %s596, 128
        $region88: #{tpu_custom_call.1} parent=83 // pred_fallthru
          _
      $region84: #{tpu_custom_call.1} parent=5 // pred_fallthru
        _
    $region6: #{tpu_custom_call.1} parent=1 // loop_footer
      %s27 = sadd.s32 1, %s23
    $region7: #{tpu_custom_call.1} parent=1 // loop_footer_branch
      %22 = sbr.rel target = $region3
    $region8: #{tpu_custom_call.1} parent=1 // loop_exit
      _
    %602 = vsyncpa [#allocation4], 1
    %s603 = scalar_lea.sflag [#allocation4], 1
    %604 = vsyncpa %s603, 1
    %605 = vsyncpa [#allocation7], 1
    %s606 = scalar_lea.sflag [#allocation7], 1
    %607 = vsyncpa %s606, 1
    %608 = vsyncpa [#allocation10], 1
    %s609 = scalar_lea.sflag [#allocation10], 1
    %610 = vsyncpa %s609, 1
    %611 = vsyncpa [#allocation5], 1
    %s612 = scalar_lea.sflag [#allocation5], 1
    %613 = vsyncpa %s612, 1

</llo_original>
